<compile_context>
chip_gen: v7x
topology: tpu7x:2x2x1
jax: 0.10.0
libtpu: 0.0.40
codegen_flags: <defaults>
</compile_context>

<pallas_src>
import functools

import jax
import jax.numpy as jnp
from jax.experimental import pallas as pl
from jax.experimental.pallas import tpu as pltpu

_MIB = 1024 * 1024
_ROW_TILE_CAP = 1024          # rows; ~saturates HBM roofline already at 512-1024
_LANE = 128


def _ceil_div(a: int, b: int) -> int:
    return -(-a // b)


def _sublane_multiple(dtype) -> int:
    itemsize = jnp.dtype(dtype).itemsize
    if itemsize >= 4:
        return 8
    if itemsize == 2:
        return 16
    return 32


def _num_tensorcores() -> int:
    # v7x has 2 TensorCores per chip; v5e/v6e have 1.
    try:
        kind = jax.devices()[0].device_kind.lower()
    except Exception:
        return 1
    return 2 if ("v7" in kind or "7x" in kind) else 1


def _vmem_limit_bytes() -> int:
    # Physical VMEM: 128 MiB (v5e/v6e), 64 MiB per TensorCore (v7x). The info
    # query may report per-chip capacity, so clamp to the per-TC minimum and
    # keep the scoped limit <= ~48 MiB (headroom for compiler scratch).
    try:
        capacity = int(pltpu.get_tpu_info().vmem_capacity_bytes)
    except Exception:
        capacity = 64 * _MIB
    capacity = min(capacity, 64 * _MIB)
    return min((capacity * 3) // 4, 48 * _MIB)


# --------------------------------------------------------------------------
# Single-pass kernel: one (row_tile, hidden_p) block per grid step.
# --------------------------------------------------------------------------
def _rmsnorm_kernel(x_ref, w_ref, o_ref, *, eps: float, inv_hidden: float):
    # x_ref: (TR, Hp); w_ref: (1, Hp) already in o_ref.dtype; o_ref: (TR, Hp).
    x = x_ref[...].astype(jnp.float32)
    # sum * (1/true_hidden) == mean over the *true* hidden; zero-padded lanes
    # contribute nothing to the sum.
    ssq = jnp.sum(x * x, axis=-1, keepdims=True)           # XLU reduce
    inv = jax.lax.rsqrt(ssq * inv_hidden + eps)             # EUP slot, ~free
    o_ref[...] = (x * inv).astype(o_ref.dtype) * w_ref[...]


def _choose_row_tile(rows: int, hidden_p: int, dtype, budget: int) -> int:
    itemsize = jnp.dtype(dtype).itemsize
    sub = _sublane_multiple(dtype)
    # Live VMEM per row ~= 3 input buffers + 2 output buffers (in x dtype)
    # plus ~2 f32 temps (the f32 cast of the tile + one elementwise temp).
    per_row = hidden_p * ((3 + 2) * itemsize + 8)
    tile = budget // max(per_row, 1)
    tile = max(sub, (tile // sub) * sub)
    tile = min(tile, _ROW_TILE_CAP)

    cores = _num_tensorcores()
    if cores > 1:
        # Target >= 4 grid steps per TensorCore so the two v7x cores stay
        # balanced even with a clipped partial last block. Skip on 1-TC chips.
        min_steps = 4 * cores
        if rows >= min_steps * sub:
            balanced = _ceil_div(_ceil_div(rows, min_steps), sub) * sub
            tile = min(tile, balanced)

    tile = min(tile, _ceil_div(rows, sub) * sub)
    return max(sub, int(tile))


# --------------------------------------------------------------------------
# Two-pass fallback for very large hidden (lane-chunked).
# --------------------------------------------------------------------------
def _ssq_kernel(x_ref, ssq_ref):
    j = pl.program_id(1)

    @pl.when(j == 0)
    def _():
        ssq_ref[...] = jnp.zeros_like(ssq_ref)

    x = x_ref[...].astype(jnp.float32)
    ssq_ref[...] += jnp.sum(x * x, axis=-1, keepdims=True)


def _normalize_kernel(x_ref, ssq_ref, w_ref, o_ref, *, eps: float,
                      inv_hidden: float):
    x = x_ref[...].astype(jnp.float32)
    inv = jax.lax.rsqrt(ssq_ref[...] * inv_hidden + eps)
    o_ref[...] = (x * inv).astype(o_ref.dtype) * w_ref[...]


def _rms_norm_two_pass(x2d, w2d, eps, hidden_true, budget, vmem_limit,
                       lane_chunk):
    rows, hidden_p = x2d.shape
    dtype = x2d.dtype
    itemsize = jnp.dtype(dtype).itemsize
    sub = _sublane_multiple(dtype)
    per_elem = 4 * itemsize + 8    # 2 in-bufs + 2 out-bufs + ~2 f32 temps

    if lane_chunk is None:
        # Widest 128-multiple chunk that still leaves room for a sub-row tile.
        lane_chunk = (budget // (sub * per_elem)) // _LANE * _LANE
    lane_chunk = max(_LANE, min((int(lane_chunk) // _LANE) * _LANE, hidden_p))
    # The chunk must divide the padded hidden exactly: a clipped partial lane
    # block would feed garbage lanes into the sum-of-squares.
    while hidden_p % lane_chunk:
        lane_chunk -= _LANE

    row_tile = budget // (lane_chunk * per_elem)
    row_tile = max(sub, (row_tile // sub) * sub)
    row_tile = min(row_tile, _ROW_TILE_CAP, _ceil_div(rows, sub) * sub)

    n_chunks = hidden_p // lane_chunk
    grid = (_ceil_div(rows, row_tile), n_chunks)
    inv_hidden = 1.0 / float(hidden_true)

    # Pass 1: per-row sum of squares, accumulated over lane chunks.
    ssq = pl.pallas_call(
        _ssq_kernel,
        out_shape=jax.ShapeDtypeStruct((rows, 1), jnp.float32),
        grid_spec=pltpu.PrefetchScalarGridSpec(
            num_scalar_prefetch=0,
            grid=grid,
            in_specs=[pl.BlockSpec((row_tile, lane_chunk),
                                   lambda i, j: (i, j))],
            out_specs=pl.BlockSpec((row_tile, 1), lambda i, j: (i, 0)),
        ),
        compiler_params=pltpu.CompilerParams(
            dimension_semantics=("parallel", "arbitrary"),
            vmem_limit_bytes=vmem_limit,
        ),
    )(x2d)

    # Pass 2: normalize each lane chunk with the finished per-row statistic.
    out2d = pl.pallas_call(
        functools.partial(_normalize_kernel, eps=eps, inv_hidden=inv_hidden),
        out_shape=jax.ShapeDtypeStruct((rows, hidden_p), dtype),
        grid_spec=pltpu.PrefetchScalarGridSpec(
            num_scalar_prefetch=0,
            grid=grid,
            in_specs=[
                pl.BlockSpec((row_tile, lane_chunk), lambda i, j: (i, j)),
                pl.BlockSpec((row_tile, 1), lambda i, j: (i, 0)),
                pl.BlockSpec((1, lane_chunk), lambda i, j: (0, j)),
            ],
            out_specs=pl.BlockSpec((row_tile, lane_chunk),
                                   lambda i, j: (i, j)),
        ),
        compiler_params=pltpu.CompilerParams(
            dimension_semantics=("parallel", "parallel"),
            vmem_limit_bytes=vmem_limit,
        ),
    )(x2d, ssq, w2d)
    return out2d


# --------------------------------------------------------------------------
# Public wrapper.
# --------------------------------------------------------------------------
def rms_norm(x: jax.Array, weight: jax.Array, eps: float = 1e-6,
             row_tile=None, lane_chunk=None) -> jax.Array:
    """Pallas RMSNorm: w * x / sqrt(mean(x^2, axis=-1) + eps), matching PyTorch."""
    orig_shape = x.shape
    hidden = orig_shape[-1]
    assert weight.shape == (hidden,)

    rows = 1
    for d in orig_shape[:-1]:
        rows *= d
    x2d = x.reshape(rows, hidden)

    # Pre-cast the weight once in the wrapper (PyTorch numerics multiply the
    # weight after casting x back to its original dtype).
    w = weight.astype(x.dtype)

    # Lane-pad hidden to a multiple of 128 so stores are lane-dense (unmasked
    # vst). Zero pad is harmless: the reduction uses sum * (1/true_hidden).
    hidden_p = _ceil_div(hidden, _LANE) * _LANE
    padded = hidden_p != hidden
    if padded:
        x2d = jnp.pad(x2d, ((0, 0), (0, hidden_p - hidden)))
        w = jnp.pad(w, (0, hidden_p - hidden))
    w2d = w.reshape(1, hidden_p)

    vmem_limit = _vmem_limit_bytes()
    budget = (vmem_limit * 7) // 10        # headroom for compiler scratch
    itemsize = jnp.dtype(x.dtype).itemsize
    sub = _sublane_multiple(x.dtype)
    inv_hidden = 1.0 / float(hidden)

    # Fallback: if even a minimal (sub x hidden_p) full-row tile overflows the
    # budget, chunk the lane axis with a two-pass kernel instead of OOMing.
    single_pass_per_row = hidden_p * ((3 + 2) * itemsize + 8)
    use_two_pass = (lane_chunk is not None) or \
                   (single_pass_per_row * sub > budget)

    if use_two_pass:
        out2d = _rms_norm_two_pass(x2d, w2d, eps, hidden, budget, vmem_limit,
                                   lane_chunk)
    else:
        if row_tile is None:
            row_tile = _choose_row_tile(rows, hidden_p, x.dtype, budget)
        else:
            row_tile = max(sub, _ceil_div(int(row_tile), sub) * sub)

        grid_rows = _ceil_div(rows, row_tile)   # partial last block is clipped

        # 3-deep input pipelining hides DMA issue latency (helps most on v7x's
        # faster HBM); only worthwhile with enough grid steps. The extra tile
        # of VMEM is already covered by the budget math above.
        if grid_rows >= 3:
            x_spec = pl.BlockSpec((row_tile, hidden_p), lambda i: (i, 0),
                                  pipeline_mode=pl.Buffered(3))
        else:
            x_spec = pl.BlockSpec((row_tile, hidden_p), lambda i: (i, 0))

        out2d = pl.pallas_call(
            functools.partial(_rmsnorm_kernel, eps=eps, inv_hidden=inv_hidden),
            out_shape=jax.ShapeDtypeStruct((rows, hidden_p), x.dtype),
            grid_spec=pltpu.PrefetchScalarGridSpec(
                num_scalar_prefetch=0,
                grid=(grid_rows,),
                in_specs=[
                    x_spec,
                    pl.BlockSpec((1, hidden_p), lambda i: (0, 0)),  # resident w
                ],
                out_specs=pl.BlockSpec((row_tile, hidden_p), lambda i: (i, 0)),
            ),
            compiler_params=pltpu.CompilerParams(
                dimension_semantics=("parallel",),
                vmem_limit_bytes=vmem_limit,
            ),
            cost_estimate=pl.CostEstimate(
                flops=4 * rows * hidden,
                transcendentals=rows,
                bytes_accessed=2 * rows * hidden_p * itemsize
                               + hidden_p * itemsize,
            ),
        )(x2d, w2d)

    if padded:
        out2d = out2d[:, :hidden]
    return out2d.reshape(orig_shape)


def rms_norm_ref(x, weight, eps=1e-6):
    """Pure-JAX reference mirroring the PyTorch _forward (no residual)."""
    orig_dtype = x.dtype
    xf = x.astype(jnp.float32)
    variance = jnp.mean(xf * xf, axis=-1, keepdims=True)
    xf = xf * jax.lax.rsqrt(variance + eps)
    return (xf.astype(orig_dtype) * weight.astype(orig_dtype)).astype(orig_dtype)


# TODO(synk): fused residual-add variant (the optional `residual` arg of
# _forward) is not exercised by the module's forward(); not implemented here.

if __name__ == "__main__":
    key = jax.random.PRNGKey(0)
    k1, k2, k3, k4, k5, k6, k7, k8 = jax.random.split(key, 8)

    # Case 1: f32, small shape, hidden multiple of 128 (single grid step).
    batch, seq, hidden = 2, 8, 128
    x = jax.random.normal(k1, (batch, seq, hidden), dtype=jnp.float32)
    w = jnp.ones((hidden,), jnp.float32) + 0.01 * jax.random.normal(k2, (hidden,))
    out = jax.block_until_ready(rms_norm(x, w, eps=1e-6))
    ref = rms_norm_ref(x, w, eps=1e-6)
    assert out.shape == x.shape and out.dtype == x.dtype
    assert jnp.allclose(out, ref, atol=1e-5, rtol=1e-5), "f32 mismatch"

    # Case 2: bf16, row count (15) that does not divide the sublane packing,
    # exercising the cdiv grid / clipped partial last row block.
    hidden2 = 256
    x2 = jax.random.normal(k3, (3, 5, hidden2), jnp.float32).astype(jnp.bfloat16)
    w2 = (jnp.ones((hidden2,), jnp.float32)
          + 0.01 * jax.random.normal(k4, (hidden2,))).astype(jnp.bfloat16)
    out2 = jax.block_until_ready(rms_norm(x2, w2, eps=1e-6))
    ref2 = rms_norm_ref(x2, w2, eps=1e-6)
    assert out2.shape == x2.shape and out2.dtype == x2.dtype
    assert jnp.allclose(out2.astype(jnp.float32), ref2.astype(jnp.float32),
                        atol=2e-2, rtol=2e-2), "bf16 mismatch"

    # Case 3: bf16, hidden NOT a multiple of 128 (lane-padding path) with
    # enough rows for multiple grid steps (exercises Buffered(3) input).
    hidden3 = 200
    x3 = jax.random.normal(k5, (4, 1024, hidden3), jnp.float32).astype(jnp.bfloat16)
    w3 = (jnp.ones((hidden3,), jnp.float32)
          + 0.01 * jax.random.normal(k6, (hidden3,))).astype(jnp.bfloat16)
    out3 = jax.block_until_ready(rms_norm(x3, w3, eps=1e-6))
    ref3 = rms_norm_ref(x3, w3, eps=1e-6)
    assert out3.shape == x3.shape and out3.dtype == x3.dtype
    assert jnp.allclose(out3.astype(jnp.float32), ref3.astype(jnp.float32),
                        atol=2e-2, rtol=2e-2), "bf16 padded-hidden mismatch"

    # Case 4: force the two-pass lane-chunked fallback path (large-hidden
    # degradation path) on a small shape to verify its correctness.
    hidden4 = 512
    x4 = jax.random.normal(k7, (2, 16, hidden4), dtype=jnp.float32)
    w4 = jnp.ones((hidden4,), jnp.float32) + 0.01 * jax.random.normal(k8, (hidden4,))
    out4 = jax.block_until_ready(rms_norm(x4, w4, eps=1e-6, lane_chunk=256))
    ref4 = rms_norm_ref(x4, w4, eps=1e-6)
    assert out4.shape == x4.shape and out4.dtype == x4.dtype
    assert jnp.allclose(out4, ref4, atol=1e-5, rtol=1e-5), "two-pass mismatch"

    print("KERNEL_OK")
</pallas_src>

<mosaic_0001>
module attributes {stable_mosaic.version = 11 : i64} {
  func.func @_rmsnorm_kernel(%arg0: i32, %arg1: memref<16x128xf32, #tpu.memory_space<vmem>>, %arg2: memref<1x128xf32, #tpu.memory_space<vmem>>, %arg3: memref<16x128xf32, #tpu.memory_space<vmem>>) attributes {dimension_semantics = [#tpu.dimension_semantics<parallel>], iteration_bounds = array<i64: 1>, scalar_prefetch = 0 : i64, scratch_operands = 0 : i64, tpu.core_type = #tpu.core_type<tc>, window_params = [{transform_indices = @transform_0, window_bounds = array<i64: 16, 128>}, {pipeline_mode = #tpu.pipeline_mode<synchronous>, transform_indices = @transform_1, window_bounds = array<i64: 1, 128>}, {transform_indices = @transform_2, window_bounds = array<i64: 16, 128>}]} {
    %c0 = arith.constant 0 : index
    %c0_0 = arith.constant 0 : index
    %0 = vector.load %arg1[%c0, %c0_0] : memref<16x128xf32, #tpu.memory_space<vmem>>, vector<16x128xf32>
    %1 = arith.mulf %0, %0 : vector<16x128xf32>
    %cst = arith.constant dense<0.000000e+00> : vector<16xf32>
    %2 = vector.multi_reduction <add>, %1, %cst [1] : vector<16x128xf32> to vector<16xf32>
    %3 = vector.shape_cast %2 : vector<16xf32> to vector<16x1xf32>
    %cst_1 = arith.constant 7.812500e-03 : f32
    %4 = vector.broadcast %cst_1 : f32 to vector<16x1xf32>
    %5 = arith.mulf %3, %4 : vector<16x1xf32>
    %cst_2 = arith.constant 9.99999997E-7 : f32
    %6 = vector.broadcast %cst_2 : f32 to vector<16x1xf32>
    %7 = arith.addf %5, %6 : vector<16x1xf32>
    %8 = math.rsqrt %7 : vector<16x1xf32>
    %9 = vector.broadcast %8 : vector<16x1xf32> to vector<16x128xf32>
    %10 = arith.mulf %0, %9 : vector<16x128xf32>
    %c0_3 = arith.constant 0 : index
    %c0_4 = arith.constant 0 : index
    %11 = vector.load %arg2[%c0_3, %c0_4] : memref<1x128xf32, #tpu.memory_space<vmem>>, vector<1x128xf32>
    %12 = vector.broadcast %11 : vector<1x128xf32> to vector<16x128xf32>
    %13 = arith.mulf %10, %12 : vector<16x128xf32>
    %c0_5 = arith.constant 0 : index
    %c0_6 = arith.constant 0 : index
    %14 = vector.load %arg3[%c0_5, %c0_6] : memref<16x128xf32, #tpu.memory_space<vmem>>, vector<16x128xf32>
    tpu.vector_store %arg3[%c0_5, %c0_6], %13 {strides = array<i32>} : memref<16x128xf32, #tpu.memory_space<vmem>>, vector<16x128xf32>,
    return
  }
  func.func @transform_0(%arg0: i32) -> (i32, i32) {
    %c0_i32 = arith.constant 0 : i32
    %c0_i32_0 = arith.constant 0 : i32
    return %arg0, %c0_i32 : i32, i32
  }
  func.func @transform_1(%arg0: i32) -> (i32, i32) {
    %c0_i32 = arith.constant 0 : i32
    %c0_i32_0 = arith.constant 0 : i32
    %c0_i32_1 = arith.constant 0 : i32
    return %c0_i32, %c0_i32_0 : i32, i32
  }
  func.func @transform_2(%arg0: i32) -> (i32, i32) {
    %c0_i32 = arith.constant 0 : i32
    %c0_i32_0 = arith.constant 0 : i32
    return %arg0, %c0_i32 : i32, i32
  }
}

</mosaic_0001>

<llo_original>
// kernel: tpu_custom_call.1
$region0: #{tpu_custom_call.1}
  #allocation0 [shape = 'u32[]', space=smem, size = 0x4, offset = 0x4, fixed_abs, tag = 'smem constant byte address 0x4 - core index']
  #allocation1 [shape = 'u32[144,128]{1,0:T(1,128)}', space=vmem, size = 0x12000, scoped, tag = 'internal scratch']
  %s0 = inlined_call_operand.hbm [shape: f32[16,128], index: 0, kind: input, shape index: {}]
  %s1 = inlined_call_operand.vmem [shape: f32[1,128], index: 1, kind: input, shape index: {}]
  %s2 = inlined_call_operand.hbm [shape: f32[16,128], index: 2, kind: output, shape index: {}]
  %s3 = sld [smem:[#allocation0]]
  $region22: #{tpu_custom_call.1} parent=0
    _
  %s5 = ssub.s32 1, %s3
  %s6 = scalar_select 0, %s5, %s3
  $region1: #{tpu_custom_call.1} parent=0
    #allocation2 [shape = 'u8[8192]{0}', space=vmem, size = 0x2000, scoped, tag = 'input window, operand 0, single buffered']
    #allocation3 [shape = 's32[1]{0}', space=sflag, size = 0x4, scoped, tag = 'scoped memory for tpu_custom_call.1']
    #allocation4 [shape = 's32[1]{0}', space=sflag, size = 0x4, scoped, tag = 'scoped memory for tpu_custom_call.1']
    #allocation5 [shape = 'u8[8192]{0}', space=vmem, size = 0x2000, scoped, tag = 'output window, operand 0, single buffered']
    %7 = vsyncpa [#allocation3], 0
    %8 = vsyncpa [#allocation4], 0
    // Predicated region
    $region2: #{tpu_custom_call.1} parent=1 // pred_check
      _
    $region3: #{tpu_custom_call.1} parent=1 // pred_check_branch
      %10 = sbr.rel (0) target = $region5
    $region4: #{tpu_custom_call.1} parent=1 // pred_region
      %s12 = ssub.s32 256, 256
      %13 = vsyncadd [#allocation3], %s12
      %s14 = sshll.u32 [#allocation2], 4
      %s15 = int_to_ptr.vmem [resolvable:$true] %s14
      %20 = dma.hbm_to_vmem [thread:$0]  %s0, 256, %s15, [#allocation3], 128, 128, 8
    $region5: #{tpu_custom_call.1} parent=1 // pred_fallthru
      _
    // Predicated region
    $region6: #{tpu_custom_call.1} parent=1 // pred_check
      _
    $region7: #{tpu_custom_call.1} parent=1 // pred_check_branch
      %22 = sbr.rel (0) target = $region9
    $region8: #{tpu_custom_call.1} parent=1 // pred_region
      _
    $region9: #{tpu_custom_call.1} parent=1 // pred_fallthru
      _
    // Predicated region
    $region10: #{tpu_custom_call.1} parent=1 // pred_check
      _
    $region11: #{tpu_custom_call.1} parent=1 // pred_check_branch
      %24 = sbr.rel (0) target = $region13
    $region12: #{tpu_custom_call.1} parent=1 // pred_region
      %25 = dma.done [#allocation3], 256
    $region13: #{tpu_custom_call.1} parent=1 // pred_fallthru
      _
    %v26 = vld [vmem:[#allocation2] sm:$0xff]
    %v27 = vld [vmem:[#allocation2 + $0x8] sm:$0xff]
    %v28 = vmul.f32 %v26, %v26
    %v29 = vmul.f32 %v27, %v27
    %30 = vadd.xlane.f32.xlu0 %v28
    %v31 = vpop.xlane.xlu0 %30
    %32 = vadd.xlane.f32.xlu0 %v29
    %v33 = vpop.xlane.xlu0 %32
    %v34 = vmul.f32 %v31, 0.0078125
    %v35 = vmul.f32 %v33, 0.0078125
    %v36 = vadd.f32 %v34, 1e-06
    %v37 = vadd.f32 %v35, 1e-06
    %v38 = vrsqrt.pop %v36
    %v39 = vrsqrt.pop %v37
    %v40 = vmul.f32 %v26, %v38
    %v41 = vmul.f32 %v27, %v39
    %v42 = vld [vmem:[%s1] sm:$0x1]
    %v44 = vlaneseq
    %v45 = vshrl.u32 %v44, 7
    %v46 = vsub.s32 0, %v45
    %v47 = vrot.slane %v42, %v46
    %v49 = vmul.f32 %v40, %v47
    %v50 = vmul.f32 %v41, %v47
    %51 = vst [vmem:[#allocation5] sm:$0xff] %v49
    %52 = vst [vmem:[#allocation5 + $0x8] sm:$0xff] %v50
    // Predicated region
    $region14: #{tpu_custom_call.1} parent=1 // pred_check
      _
    $region15: #{tpu_custom_call.1} parent=1 // pred_check_branch
      %54 = sbr.rel (0) target = $region17
    $region16: #{tpu_custom_call.1} parent=1 // pred_region
      %s56 = ssub.s32 256, 256
      %57 = vsyncadd [#allocation4], %s56
      %s58 = sshll.u32 [#allocation5], 4
      %s59 = int_to_ptr.vmem [resolvable:$true] %s58
      %64 = dma.vmem_to_hbm [thread:$0]  %s59, 256, %s2, [#allocation4], 128, 128, 8
    $region17: #{tpu_custom_call.1} parent=1 // pred_fallthru
      _
    // Predicated region
    $region18: #{tpu_custom_call.1} parent=1 // pred_check
      _
    $region19: #{tpu_custom_call.1} parent=1 // pred_check_branch
      %66 = sbr.rel (0) target = $region21
    $region20: #{tpu_custom_call.1} parent=1 // pred_region
      %67 = dma.done [#allocation4], 256
    $region21: #{tpu_custom_call.1} parent=1 // pred_fallthru
      _
    %68 = vsyncpa [#allocation3], 1
    %69 = vsyncpa [#allocation4], 1

</llo_original>
